<compile_context>
chip_gen: v7x
topology: tpu7x:2x2x1
jax: 0.10.0
libtpu: 0.0.40
codegen_flags: <defaults>
</compile_context>

<pallas_src>
import jax
import jax.numpy as jnp
from jax.experimental import pallas as pl
from jax.experimental.pallas import tpu as pltpu

AE_WEIGHT = 12.0


def _make_kernel(n, c, tile_r, lane_d, rows, total_elems, num_tiles,
                 needs_row_mask, acc_is_8row):
    inv_n = 1.0 / float(n)
    inv_total = 1.0 / float(total_elems)          # TRUE element count (pad excluded)
    rows_last = rows - (num_tiles - 1) * tile_r

    def kernel(logit_ref, label_ref, ori_ref, rec_ref, out_ref, acc_ref, ce_ref):
        i = pl.program_id(0)

        # ---- step 0: zero accumulator + cross-entropy (overlaps AE tile prefetch) ----
        @pl.when(i == 0)
        def _():
            acc_ref[...] = jnp.zeros_like(acc_ref)
            logits = logit_ref[...].astype(jnp.float32)                      # (n, c)
            m = jnp.max(logits, axis=-1, keepdims=True)
            lse = jnp.log(jnp.sum(jnp.exp(logits - m), axis=-1, keepdims=True)) + m
            cls_ids = jax.lax.broadcasted_iota(jnp.int32, (n, c), 1)
            onehot = (cls_ids == label_ref[...]).astype(jnp.float32)         # (n, c)
            label_logit = jnp.sum(onehot * logits, axis=-1, keepdims=True)   # (n, 1)
            ce_ref[0] = jnp.sum(lse - label_logit) * inv_n

        # ---- per-tile AE partial sums (pure VPU in the steady state) ----
        def accumulate(mask_rows):
            diff = ori_ref[...].astype(jnp.float32) - rec_ref[...].astype(jnp.float32)
            sq = diff * diff
            if mask_rows:
                row = jax.lax.broadcasted_iota(jnp.int32, (tile_r, 1), 0)
                # True select: OOB garbage/NaN in masked rows never propagates.
                sq = jnp.where(row < rows_last, sq, 0.0)
            if acc_is_8row:
                acc_ref[...] += jnp.sum(sq.reshape(tile_r // 8, 8, lane_d), axis=0)
            else:
                acc_ref[...] += jnp.sum(sq, axis=0, keepdims=True)

        if needs_row_mask:
            @pl.when(i < num_tiles - 1)
            def _():
                accumulate(False)

            @pl.when(i == num_tiles - 1)
            def _():
                accumulate(True)
        else:
            accumulate(False)

        # ---- last step: one sublane+lane reduce, combine with CE, write scalars ----
        @pl.when(i == pl.num_programs(0) - 1)
        def _():
            ae = jnp.sum(acc_ref[...]) * inv_total
            ce = ce_ref[0]
            out_ref[0] = ce + AE_WEIGHT * ae
            out_ref[1] = ce
            out_ref[2] = ae

    return kernel


def _vmem_budget_bytes():
    """Returns (AE working-set budget, vmem_limit_bytes) per TPU generation."""
    try:
        cap = int(getattr(pltpu.get_tpu_info(), "vmem_capacity_bytes", 0) or 0)
    except Exception:
        cap = 0
    if cap >= 100 * 1024 * 1024:                        # v5e / v6e: 128 MiB physical
        return 24 * 1024 * 1024, 64 * 1024 * 1024
    return 8 * 1024 * 1024, 32 * 1024 * 1024            # v7x-safe (64 MiB) / unknown


def _choose_lane_dim(total):
    for cand in (2048, 1024, 512, 256, 128):
        if total >= cand and total % cand == 0:
            return cand
    return 512 if total >= 512 else 128


def reduction_ae_loss(logit, label, glob_ori, glob_recons, *,
                      lane_dim=None, tile_rows=None):
    """Returns (total_loss, global_loss, ae_loss) as float32 scalars."""
    logit = jnp.asarray(logit)                           # native dtype, cast in-kernel
    label2d = jnp.asarray(label, jnp.int32).reshape(-1, 1)
    n, c = logit.shape

    flat_ori = jnp.asarray(glob_ori).reshape(-1)
    flat_rec = jnp.asarray(glob_recons).reshape(-1)
    total = int(flat_ori.shape[0])
    itemsize = flat_ori.dtype.itemsize

    # ---- lane-dense layout for the AE stream ----
    lane_d = int(lane_dim) if lane_dim is not None else _choose_lane_dim(total)
    pad = (-total) % lane_d
    if pad:
        # One-time zero pad of BOTH slabs: padded tail contributes exactly 0 to the
        # squared-diff sum; the MSE divisor stays the TRUE element count.
        flat_ori = jnp.pad(flat_ori, (0, pad))
        flat_rec = jnp.pad(flat_rec, (0, pad))
    rows = (total + pad) // lane_d
    ori2d = flat_ori.reshape(rows, lane_d)
    rec2d = flat_rec.reshape(rows, lane_d)

    # ---- tile rows sized by bytes (2 inputs x 2 pipeline buffers) ----
    budget, vmem_limit = _vmem_budget_bytes()
    align = max(8, 32 // itemsize)                       # 8 f32 / 16 bf16 / 32 int8
    if tile_rows is None:
        per_row = 4 * lane_d * itemsize
        tile_r = max(align, (budget // per_row) // align * align)
    else:
        tile_r = int(tile_rows)
    if tile_r >= rows:
        tile_r = rows                                    # single full-extent block
        num_tiles = 1
        needs_row_mask = False
    else:
        tile_r = max(align, (tile_r // align) * align)
        num_tiles = -(-rows // tile_r)
        needs_row_mask = (rows % tile_r) != 0

    acc_is_8row = (tile_r % 8 == 0)
    acc_rows = 8 if acc_is_8row else 1

    kernel = _make_kernel(n, c, tile_r, lane_d, rows, total, num_tiles,
                          needs_row_mask, acc_is_8row)

    cost = pl.CostEstimate(
        flops=3 * (total + pad) + 5 * n * c,
        transcendentals=n * c + n,
        bytes_accessed=2 * (total + pad) * itemsize
                       + n * c * logit.dtype.itemsize + n * 4 + 3 * 4,
    )

    out = pl.pallas_call(
        kernel,
        grid=(num_tiles,),
        in_specs=[
            pl.BlockSpec((n, c), lambda i: (0, 0)),            # fetched once, VMEM-resident
            pl.BlockSpec((n, 1), lambda i: (0, 0)),            # fetched once, VMEM-resident
            pl.BlockSpec((tile_r, lane_d), lambda i: (i, 0)),  # pipelined AE tiles
            pl.BlockSpec((tile_r, lane_d), lambda i: (i, 0)),
        ],
        out_specs=pl.BlockSpec(memory_space=pltpu.MemorySpace.SMEM),
        out_shape=jax.ShapeDtypeStruct((3,), jnp.float32),
        scratch_shapes=[
            pltpu.VMEM((acc_rows, lane_d), jnp.float32),       # per-lane AE partials
            pltpu.SMEM((1,), jnp.float32),                     # CE stash (step 0 -> finalize)
        ],
        compiler_params=pltpu.CompilerParams(
            dimension_semantics=("arbitrary",),
            vmem_limit_bytes=vmem_limit,
        ),
        cost_estimate=cost,
    )(logit, label2d, ori2d, rec2d)

    return out[0], out[1], out[2]


def _reference(logit, label, glob_ori, glob_recons):
    # Pure-JAX reference for sanity checking.
    logp = jax.nn.log_softmax(logit.astype(jnp.float32), axis=-1)
    ce = -jnp.mean(jnp.take_along_axis(logp, label[:, None], axis=-1))
    diff = glob_ori.astype(jnp.float32) - glob_recons.astype(jnp.float32)
    ae = jnp.mean(diff ** 2)
    return ce + AE_WEIGHT * ae, ce, ae


if __name__ == "__main__":
    key = jax.random.PRNGKey(0)
    k1, k2, k3, k4, k5, k6 = jax.random.split(key, 6)

    N, C = 8, 16                 # batch, num classes
    FEAT = (5, 8, 64)            # 2560 elements -> lane-dense (5, 512) slab by default

    logit = jax.random.normal(k1, (N, C), dtype=jnp.float32)
    label = jax.random.randint(k2, (N,), 0, C, dtype=jnp.int32)
    glob_ori = jax.random.normal(k3, FEAT, dtype=jnp.float32)
    glob_recons = glob_ori + 0.1 * jax.random.normal(k4, FEAT, dtype=jnp.float32)

    # 1) Default: auto lane-dim (512), single full-extent block.
    r1 = reduction_ae_loss(logit, label, glob_ori, glob_recons)
    # 2) Forced multi-tile with ragged (pl.when-masked) last tile: lane_dim=128 ->
    #    20 rows, tile_rows=8 -> tiles of 8/8/4.
    r2 = reduction_ae_loss(logit, label, glob_ori, glob_recons,
                           lane_dim=128, tile_rows=8)
    # 3) Element count not a multiple of 128 -> zero-pad path.
    ori3 = jax.random.normal(k5, (7, 33), dtype=jnp.float32)
    rec3 = ori3 + 0.05 * jax.random.normal(k6, (7, 33), dtype=jnp.float32)
    r3 = reduction_ae_loss(logit, label, ori3, rec3)

    jax.block_until_ready((r1, r2, r3))

    ref1 = _reference(logit, label, glob_ori, glob_recons)
    ref3 = _reference(logit, label, ori3, rec3)
    for got, ref in ((r1, ref1), (r2, ref1), (r3, ref3)):
        for g, r in zip(got, ref):
            assert jnp.allclose(g, r, atol=1e-5, rtol=1e-5), (g, r)

    print("KERNEL_OK")
</pallas_src>

<mosaic_0001>
module attributes {stable_mosaic.version = 11 : i64} {
  func.func @kernel(%arg0: i32, %arg1: memref<8x16xf32, #tpu.memory_space<vmem>>, %arg2: memref<8x1xi32, #tpu.memory_space<vmem>>, %arg3: memref<5x512xf32, #tpu.memory_space<vmem>>, %arg4: memref<5x512xf32, #tpu.memory_space<vmem>>, %arg5: memref<3xf32, #tpu.memory_space<smem>>, %arg6: memref<1x512xf32, #tpu.memory_space<vmem>>, %arg7: memref<1xf32, #tpu.memory_space<smem>>) attributes {dimension_semantics = [#tpu.dimension_semantics<arbitrary>], iteration_bounds = array<i64: 1>, scalar_prefetch = 0 : i64, scratch_operands = 2 : i64, tpu.core_type = #tpu.core_type<tc>, window_params = [{pipeline_mode = #tpu.pipeline_mode<synchronous>, transform_indices = @transform_0, window_bounds = array<i64: 8, 16>}, {pipeline_mode = #tpu.pipeline_mode<synchronous>, transform_indices = @transform_1, window_bounds = array<i64: 8, 1>}, {transform_indices = @transform_2, window_bounds = array<i64: 5, 512>}, {transform_indices = @transform_3, window_bounds = array<i64: 5, 512>}, {transform_indices = @transform_4, window_bounds = array<i64: 3>}]} {
    %c0_i32 = arith.constant 0 : i32
    %0 = arith.cmpi eq, %arg0, %c0_i32 : i32
    %1 = arith.extui %0 : i1 to i32
    %c0_i32_0 = arith.constant 0 : i32
    %2 = arith.cmpi ne, %1, %c0_i32_0 : i32
    scf.if %2 {
      %cst_10 = arith.constant 0.000000e+00 : f32
      %15 = vector.broadcast %cst_10 : f32 to vector<1x512xf32>
      %c0_11 = arith.constant 0 : index
      %c0_12 = arith.constant 0 : index
      %16 = vector.load %arg6[%c0_11, %c0_12] : memref<1x512xf32, #tpu.memory_space<vmem>>, vector<1x512xf32>
      tpu.vector_store %arg6[%c0_11, %c0_12], %15 {strides = array<i32>} : memref<1x512xf32, #tpu.memory_space<vmem>>, vector<1x512xf32>,
      %c0_13 = arith.constant 0 : index
      %c0_14 = arith.constant 0 : index
      %17 = vector.load %arg1[%c0_13, %c0_14] : memref<8x16xf32, #tpu.memory_space<vmem>>, vector<8x16xf32>
      %cst_15 = arith.constant dense<0xFF800000> : vector<8xf32>
      %18 = vector.multi_reduction <maximumf>, %17, %cst_15 [1] : vector<8x16xf32> to vector<8xf32>
      %19 = vector.shape_cast %18 : vector<8xf32> to vector<8x1xf32>
      %20 = vector.broadcast %19 : vector<8x1xf32> to vector<8x16xf32>
      %21 = arith.subf %17, %20 : vector<8x16xf32>
      %22 = math.exp %21 : vector<8x16xf32>
      %cst_16 = arith.constant dense<0.000000e+00> : vector<8xf32>
      %23 = vector.multi_reduction <add>, %22, %cst_16 [1] : vector<8x16xf32> to vector<8xf32>
      %24 = vector.shape_cast %23 : vector<8xf32> to vector<8x1xf32>
      %25 = math.log %24 : vector<8x1xf32>
      %26 = arith.addf %25, %19 : vector<8x1xf32>
      %27 = tpu.iota {dimensions = array<i32: 1>} : vector<8x16xi32>
      %c0_17 = arith.constant 0 : index
      %c0_18 = arith.constant 0 : index
      %28 = vector.load %arg2[%c0_17, %c0_18] : memref<8x1xi32, #tpu.memory_space<vmem>>, vector<8x1xi32>
      %29 = vector.broadcast %28 : vector<8x1xi32> to vector<8x16xi32>
      %30 = arith.cmpi eq, %27, %29 : vector<8x16xi32>
      %31 = arith.extui %30 : vector<8x16xi1> to vector<8x16xi32>
      %32 = arith.sitofp %31 : vector<8x16xi32> to vector<8x16xf32>
      %33 = arith.mulf %32, %17 : vector<8x16xf32>
      %cst_19 = arith.constant dense<0.000000e+00> : vector<8xf32>
      %34 = vector.multi_reduction <add>, %33, %cst_19 [1] : vector<8x16xf32> to vector<8xf32>
      %35 = vector.shape_cast %34 : vector<8xf32> to vector<8x1xf32>
      %36 = arith.subf %26, %35 : vector<8x1xf32>
      %37 = vector.shape_cast %36 : vector<8x1xf32> to vector<1x8x1xf32>
      %cst_20 = arith.constant dense<0.000000e+00> : vector<1xf32>
      %38 = vector.multi_reduction <add>, %37, %cst_20 [1, 2] : vector<1x8x1xf32> to vector<1xf32>
      %39 = vector.shape_cast %38 : vector<1xf32> to vector<1x1x1xf32>
      %40 = vector.extract %39[0, 0, 0] : f32 from vector<1x1x1xf32>
      %cst_21 = arith.constant 1.250000e-01 : f32
      %41 = arith.mulf %40, %cst_21 : f32
      %c0_22 = arith.constant 0 : index
      %42 = memref.load %arg7[%c0_22] : memref<1xf32, #tpu.memory_space<smem>>
      memref.store %41, %arg7[%c0_22] : memref<1xf32, #tpu.memory_space<smem>>
    } else {
    }
    %c0 = arith.constant 0 : index
    %c0_1 = arith.constant 0 : index
    %3 = vector.load %arg3[%c0, %c0_1] : memref<5x512xf32, #tpu.memory_space<vmem>>, vector<5x512xf32>
    %c0_2 = arith.constant 0 : index
    %c0_3 = arith.constant 0 : index
    %4 = vector.load %arg4[%c0_2, %c0_3] : memref<5x512xf32, #tpu.memory_space<vmem>>, vector<5x512xf32>
    %5 = arith.subf %3, %4 : vector<5x512xf32>
    %6 = arith.mulf %5, %5 : vector<5x512xf32>
    %c0_4 = arith.constant 0 : index
    %c0_5 = arith.constant 0 : index
    %7 = vector.load %arg6[%c0_4, %c0_5] : memref<1x512xf32, #tpu.memory_space<vmem>>, vector<1x512xf32>
    %cst = arith.constant dense<0.000000e+00> : vector<512xf32>
    %8 = vector.multi_reduction <add>, %6, %cst [0] : vector<5x512xf32> to vector<512xf32>
    %9 = vector.shape_cast %8 : vector<512xf32> to vector<1x512xf32>
    %10 = arith.addf %7, %9 : vector<1x512xf32>
    %c0_6 = arith.constant 0 : index
    %c0_7 = arith.constant 0 : index
    %11 = vector.load %arg6[%c0_6, %c0_7] : memref<1x512xf32, #tpu.memory_space<vmem>>, vector<1x512xf32>
    tpu.vector_store %arg6[%c0_6, %c0_7], %10 {strides = array<i32>} : memref<1x512xf32, #tpu.memory_space<vmem>>, vector<1x512xf32>,
    %c0_i32_8 = arith.constant 0 : i32
    %12 = arith.cmpi eq, %arg0, %c0_i32_8 : i32
    %13 = arith.extui %12 : i1 to i32
    %c0_i32_9 = arith.constant 0 : i32
    %14 = arith.cmpi ne, %13, %c0_i32_9 : i32
    scf.if %14 {
      %c0_10 = arith.constant 0 : index
      %c0_11 = arith.constant 0 : index
      %15 = vector.load %arg6[%c0_10, %c0_11] : memref<1x512xf32, #tpu.memory_space<vmem>>, vector<1x512xf32>
      %16 = vector.shape_cast %15 : vector<1x512xf32> to vector<1x1x512xf32>
      %cst_12 = arith.constant dense<0.000000e+00> : vector<1xf32>
      %17 = vector.multi_reduction <add>, %16, %cst_12 [1, 2] : vector<1x1x512xf32> to vector<1xf32>
      %18 = vector.shape_cast %17 : vector<1xf32> to vector<1x1x1xf32>
      %19 = vector.extract %18[0, 0, 0] : f32 from vector<1x1x1xf32>
      %cst_13 = arith.constant 3.906250e-04 : f32
      %20 = arith.mulf %19, %cst_13 : f32
      %c0_14 = arith.constant 0 : index
      %21 = memref.load %arg7[%c0_14] : memref<1xf32, #tpu.memory_space<smem>>
      %cst_15 = arith.constant 1.200000e+01 : f32
      %22 = arith.mulf %cst_15, %20 : f32
      %23 = arith.addf %21, %22 : f32
      %c0_16 = arith.constant 0 : index
      %24 = memref.load %arg5[%c0_16] : memref<3xf32, #tpu.memory_space<smem>>
      memref.store %23, %arg5[%c0_16] : memref<3xf32, #tpu.memory_space<smem>>
      %c1 = arith.constant 1 : index
      %25 = memref.load %arg5[%c1] : memref<3xf32, #tpu.memory_space<smem>>
      memref.store %21, %arg5[%c1] : memref<3xf32, #tpu.memory_space<smem>>
      %c2 = arith.constant 2 : index
      %26 = memref.load %arg5[%c2] : memref<3xf32, #tpu.memory_space<smem>>
      memref.store %20, %arg5[%c2] : memref<3xf32, #tpu.memory_space<smem>>
    } else {
    }
    return
  }
  func.func @transform_0(%arg0: i32) -> (i32, i32) {
    %c0_i32 = arith.constant 0 : i32
    %c0_i32_0 = arith.constant 0 : i32
    %c0_i32_1 = arith.constant 0 : i32
    return %c0_i32, %c0_i32_0 : i32, i32
  }
  func.func @transform_1(%arg0: i32) -> (i32, i32) {
    %c0_i32 = arith.constant 0 : i32
    %c0_i32_0 = arith.constant 0 : i32
    %c0_i32_1 = arith.constant 0 : i32
    return %c0_i32, %c0_i32_0 : i32, i32
  }
  func.func @transform_2(%arg0: i32) -> (i32, i32) {
    %c0_i32 = arith.constant 0 : i32
    %c0_i32_0 = arith.constant 0 : i32
    return %arg0, %c0_i32 : i32, i32
  }
  func.func @transform_3(%arg0: i32) -> (i32, i32) {
    %c0_i32 = arith.constant 0 : i32
    %c0_i32_0 = arith.constant 0 : i32
    return %arg0, %c0_i32 : i32, i32
  }
  func.func @transform_4(%arg0: i32) -> i32 {
    %c0_i32 = arith.constant 0 : i32
    %c0_i32_0 = arith.constant 0 : i32
    return %c0_i32 : i32
  }
}

</mosaic_0001>

<llo_original>
// kernel: tpu_custom_call.1
$region0: #{tpu_custom_call.1}
  #allocation0 [shape = 'u32[]', space=smem, size = 0x4, offset = 0x4, fixed_abs, tag = 'smem constant byte address 0x4 - core index']
  #allocation1 [shape = 'u32[144,128]{1,0:T(1,128)}', space=vmem, size = 0x12000, scoped, tag = 'internal scratch']
  #allocation2 [shape = 'f32[1,512]{1,0:T(1,128)}', space=vmem, size = 0x800, scoped, tag = 'scratch operand']
  #allocation3 [shape = 'f32[1]{0:T(128)}', space=smem, size = 0x200, scoped, tag = 'scratch operand']
  %s0 = inlined_call_operand.vmem [shape: f32[8,16], index: 0, kind: input, shape index: {}]
  %s1 = inlined_call_operand.vmem [shape: s32[8,1], index: 1, kind: input, shape index: {}]
  %s2 = inlined_call_operand.hbm [shape: f32[5,512], index: 2, kind: input, shape index: {}]
  %s3 = inlined_call_operand.hbm [shape: f32[5,512], index: 3, kind: input, shape index: {}]
  %s4 = inlined_call_operand.hbm [shape: f32[3], index: 4, kind: output, shape index: {}]
  %s5 = sld [smem:[#allocation0]]
  $region42: #{tpu_custom_call.1} parent=0
    _
  %s7 = ssub.s32 1, %s5
  %s8 = scalar_select 0, %s7, %s5
  $region1: #{tpu_custom_call.1} parent=0
    #allocation4 [shape = 'u8[16384]{0}', space=vmem, size = 0x4000, scoped, tag = 'input window, operand 2, single buffered']
    #allocation5 [shape = 's32[1]{0}', space=sflag, size = 0x4, scoped, tag = 'scoped memory for tpu_custom_call.1']
    #allocation6 [shape = 's32[1]{0}', space=sflag, size = 0x4, scoped, tag = 'scoped memory for tpu_custom_call.1']
    #allocation7 [shape = 'u8[16384]{0}', space=vmem, size = 0x4000, scoped, tag = 'input window, operand 3, single buffered']
    #allocation8 [shape = 's32[1]{0}', space=sflag, size = 0x4, scoped, tag = 'scoped memory for tpu_custom_call.1']
    #allocation9 [shape = 'u8[512]{0}', space=smem, size = 0x200, scoped, tag = 'output window, operand 0, single buffered']
    %9 = vsyncpa [#allocation5], 0
    %10 = vsyncpa [#allocation8], 0
    %11 = vsyncpa [#allocation6], 0
    // Predicated region
    $region2: #{tpu_custom_call.1} parent=1 // pred_check
      _
    $region3: #{tpu_custom_call.1} parent=1 // pred_check_branch
      %13 = sbr.rel (0) target = $region5
    $region4: #{tpu_custom_call.1} parent=1 // pred_region
      _
    $region5: #{tpu_custom_call.1} parent=1 // pred_fallthru
      _
    // Predicated region
    $region6: #{tpu_custom_call.1} parent=1 // pred_check
      _
    $region7: #{tpu_custom_call.1} parent=1 // pred_check_branch
      %15 = sbr.rel (0) target = $region9
    $region8: #{tpu_custom_call.1} parent=1 // pred_region
      _
    $region9: #{tpu_custom_call.1} parent=1 // pred_fallthru
      _
    // Predicated region
    $region10: #{tpu_custom_call.1} parent=1 // pred_check
      _
    $region11: #{tpu_custom_call.1} parent=1 // pred_check_branch
      %17 = sbr.rel (0) target = $region13
    $region12: #{tpu_custom_call.1} parent=1 // pred_region
      %s19 = ssub.s32 512, 512
      %20 = vsyncadd [#allocation5], %s19
      %s22 = sshll.u32 [#allocation4], 4
      %s23 = int_to_ptr.vmem [resolvable:$true] %s22
      %25 = dma.hbm_to_vmem [thread:$0]  %s2, 512, %s23, [#allocation5]
    $region13: #{tpu_custom_call.1} parent=1 // pred_fallthru
      _
    // Predicated region
    $region14: #{tpu_custom_call.1} parent=1 // pred_check
      _
    $region15: #{tpu_custom_call.1} parent=1 // pred_check_branch
      %27 = sbr.rel (0) target = $region17
    $region16: #{tpu_custom_call.1} parent=1 // pred_region
      %s29 = ssub.s32 512, 512
      %30 = vsyncadd [#allocation8], %s29
      %s32 = sshll.u32 [#allocation7], 4
      %s33 = int_to_ptr.vmem [resolvable:$true] %s32
      %35 = dma.hbm_to_vmem [thread:$0]  %s3, 512, %s33, [#allocation8]
    $region17: #{tpu_custom_call.1} parent=1 // pred_fallthru
      _
    // Predicated region
    $region18: #{tpu_custom_call.1} parent=1 // pred_check
      _
    $region19: #{tpu_custom_call.1} parent=1 // pred_check_branch
      %37 = sbr.rel (0) target = $region21
    $region20: #{tpu_custom_call.1} parent=1 // pred_region
      %38 = dma.done [#allocation5], 512
    $region21: #{tpu_custom_call.1} parent=1 // pred_fallthru
      _
    // Predicated region
    $region22: #{tpu_custom_call.1} parent=1 // pred_check
      _
    $region23: #{tpu_custom_call.1} parent=1 // pred_check_branch
      %40 = sbr.rel (0) target = $region25
    $region24: #{tpu_custom_call.1} parent=1 // pred_region
      %41 = dma.done [#allocation8], 512
    $region25: #{tpu_custom_call.1} parent=1 // pred_fallthru
      _
    %p42 = scmp.eq.s32.totalorder 0, 0
    // Predicated region
    $region26: #{tpu_custom_call.1} parent=1 // pred_check
      %p43 = pneg %p42
    $region27: #{tpu_custom_call.1} parent=1 // pred_check_branch
      %45 = sbr.rel (%p43) target = $region29
    $region28: #{tpu_custom_call.1} parent=1 // pred_region
      %v46 = vlaneseq
      %vm47 = vcmp.ge.s32.totalorder %v46, 0
      %vm48 = vcmp.lt.s32.totalorder %v46, 512
      %vm49 = vmand %vm47, %vm48
      %50 = vst.msk [vmem:[#allocation2] sm:$0xf] %vm49, 0.0
      %v51 = vld [vmem:[%s0] sm:$0xff]
      %vm52 = vcmask 130048
      %v53 = vsel %vm52, %v51, -inf
      %54 = vmax.xlane.f32.xlu0 %v53
      %v55 = vpop.xlane.xlu0 %54
      %v56 = vsub.f32 %v51, %v55
      %v57 = vmul.f32 %v56, 1.442695
      %v58 = vpow.pop %v57
      %v59 = vsel %vm52, %v58, 0.0
      %60 = vadd.xlane.f32.xlu0 %v59
      %v61 = vpop.xlane.xlu0 %60
      %v62 = vlog2.pop %v61
      %v63 = vmul.f32 %v62, 0.6931472
      %v64 = vadd.f32 %v63, %v55
      %v65 = vlaneseq
      %v66 = vand.u32 %v65, 127
      %v67 = vld [vmem:[%s1] sm:$0xff]
      %68 = vset.pattern.permute.xlu0 0
      %69 = vperm.xlu0 %68, %v67
      %v70 = vpop.permute.xlu0 %69
      %vm71 = vcmp.eq.s32.totalorder %v66, %v70
      %v72 = vsel %vm71, 1, 0
      %v73 = vcvt.s32.f32 %v72
      %v74 = vmul.f32 %v73, %v51
      %v75 = vsel %vm52, %v74, 0.0
      %76 = vadd.xlane.f32.xlu0 %v75
      %v77 = vpop.xlane.xlu0 %76
      %v78 = vsub.f32 %v64, %v77
      %vm79 = vcmask 7168
      %v80 = vsel %vm79, %v78, 0.0
      %81 = vadd.xlane.f32.xlu0 %v80
      %v82 = vpop.xlane.xlu0 %81
      %v83 = vrot.slane %v82, 4
      %v84 = vadd.f32 %v82, %v83
      %v85 = vrot.slane %v84, 2
      %v86 = vadd.f32 %v84, %v85
      %v87 = vrot.slane %v86, 1
      %v88 = vadd.f32 %v86, %v87
      %s89 = vtos %v88
      %s90 = smul.f32 %s89, 0.125
      %s91 = scalar_lea.smem [#allocation3], 0
      %92 = sst [smem:[%s91]] %s90
    $region29: #{tpu_custom_call.1} parent=1 // pred_fallthru
      _
    %v93 = vld [vmem:[#allocation4] sm:$0x1f]
    %v94 = vld [vmem:[#allocation4 + $0x8] sm:$0x1f]
    %v95 = vld [vmem:[#allocation4 + $0x10] sm:$0x1f]
    %v96 = vld [vmem:[#allocation4 + $0x18] sm:$0x1f]
    %v97 = vld [vmem:[#allocation7] sm:$0x1f]
    %v98 = vld [vmem:[#allocation7 + $0x8] sm:$0x1f]
    %v99 = vld [vmem:[#allocation7 + $0x10] sm:$0x1f]
    %v100 = vld [vmem:[#allocation7 + $0x18] sm:$0x1f]
    %v101 = vsub.f32 %v93, %v97
    %v102 = vsub.f32 %v94, %v98
    %v103 = vsub.f32 %v95, %v99
    %v104 = vsub.f32 %v96, %v100
    %v105 = vmul.f32 %v101, %v101
    %v106 = vmul.f32 %v102, %v102
    %v107 = vmul.f32 %v103, %v103
    %v108 = vmul.f32 %v104, %v104
    %v109 = vld [vmem:[#allocation2] sm:$0xf]
    %vm110 = vcmask 1044480
    %v111 = vsel %vm110, %v105, 0.0
    %v112 = vrot.slane %v111, 4
    %v113 = vadd.f32 %v111, %v112
    %v114 = vrot.slane %v113, 2
    %v115 = vadd.f32 %v113, %v114
    %v116 = vrot.slane %v115, 1
    %v117 = vadd.f32 %v115, %v116
    %v118 = vsel %vm110, %v106, 0.0
    %v119 = vrot.slane %v118, 4
    %v120 = vadd.f32 %v118, %v119
    %v121 = vrot.slane %v120, 2
    %v122 = vadd.f32 %v120, %v121
    %v123 = vrot.slane %v122, 1
    %v124 = vadd.f32 %v122, %v123
    %v125 = vsel %vm110, %v107, 0.0
    %v126 = vrot.slane %v125, 4
    %v127 = vadd.f32 %v125, %v126
    %v128 = vrot.slane %v127, 2
    %v129 = vadd.f32 %v127, %v128
    %v130 = vrot.slane %v129, 1
    %v131 = vadd.f32 %v129, %v130
    %v132 = vsel %vm110, %v108, 0.0
    %v133 = vrot.slane %v132, 4
    %v134 = vadd.f32 %v132, %v133
    %v135 = vrot.slane %v134, 2
    %v136 = vadd.f32 %v134, %v135
    %v137 = vrot.slane %v136, 1
    %v138 = vadd.f32 %v136, %v137
    %v143 = vcombine.low %v117, %v124
    %v144 = vcombine.low %v131, %v138
    %v146 = vunpack.c.l.s4 1966171168
    %v147 = vunpack.c.0.s8 %v146
    %v148 = vlaneseq
    %v149 = vshrl.u32 %v148, 7
    %v150 = vsub.s32 %v147, %v149
    %v151 = vrot.slane %v143, %v150
    %v153 = vunpack.c.l.s4 1966171168
    %v154 = vunpack.c.0.s8 %v153
    %v155 = vlaneseq
    %v156 = vshrl.u32 %v155, 7
    %v157 = vsub.s32 %v154, %v156
    %v158 = vrot.slane %v144, %v157
    %v159 = vcombine.low %v151, %v158
    %v161 = vunpack.c.l.s4 1966171168
    %v162 = vunpack.c.0.s8 %v161
    %v163 = vlaneseq
    %v164 = vshrl.u32 %v163, 7
    %v165 = vsub.s32 %v162, %v164
    %v166 = vrot.slane %v159, %v165
    %v168 = vadd.f32 %v109, %v166
    %v169 = vlaneseq
    %vm170 = vcmp.ge.s32.totalorder %v169, 0
    %vm171 = vcmp.lt.s32.totalorder %v169, 512
    %vm172 = vmand %vm170, %vm171
    %173 = vst.msk [vmem:[#allocation2] sm:$0xf] %vm172, %v168
    // Predicated region
    $region30: #{tpu_custom_call.1} parent=1 // pred_check
      %p174 = pneg %p42
    $region31: #{tpu_custom_call.1} parent=1 // pred_check_branch
      %176 = sbr.rel (%p174) target = $region33
    $region32: #{tpu_custom_call.1} parent=1 // pred_region
      %v177 = vld [vmem:[#allocation2] sm:$0xf]
      %v179 = vlaneseq
      %v180 = vshrl.u32 %v179, 7
      %v181 = vsub.s32 0, %v180
      %v182 = vrot.slane %v177, %v181
      %v183 = vlaneseq
      %v184 = vshrl.u32 %v183, 7
      %v185 = vsub.s32 1, %v184
      %v186 = vrot.slane %v177, %v185
      %v187 = vlaneseq
      %v188 = vshrl.u32 %v187, 7
      %v189 = vsub.s32 2, %v188
      %v190 = vrot.slane %v177, %v189
      %v191 = vlaneseq
      %v192 = vshrl.u32 %v191, 7
      %v193 = vsub.s32 3, %v192
      %v194 = vrot.slane %v177, %v193
      %vm199 = vcmask 1040384
      %v200 = vsel %vm199, %v182, 0.0
      %v201 = vsel %vm199, %v186, 0.0
      %v202 = vadd.f32 %v200, %v201
      %v203 = vsel %vm199, %v190, 0.0
      %v204 = vadd.f32 %v202, %v203
      %v205 = vsel %vm199, %v194, 0.0
      %v206 = vadd.f32 %v204, %v205
      %207 = vadd.xlane.f32.xlu0 %v206
      %v208 = vpop.xlane.xlu0 %207
      %v209 = vrot.slane %v208, 4
      %v210 = vadd.f32 %v208, %v209
      %v211 = vrot.slane %v210, 2
      %v212 = vadd.f32 %v210, %v211
      %v213 = vrot.slane %v212, 1
      %v214 = vadd.f32 %v212, %v213
      %s215 = vtos %v214
      %s216 = smul.f32 %s215, 0.000390625
      %s217 = sld [smem:[#allocation3]]
      %s218 = smul.f32 %s216, 12.0
      %s219 = sadd.f32 %s217, %s218
      %s220 = scalar_lea.smem [#allocation9], 0
      %221 = sst [smem:[%s220]] %s219
      %s222 = scalar_lea.smem [#allocation9], 1
      %223 = sst [smem:[%s222]] %s217
      %s224 = scalar_lea.smem [#allocation9], 2
      %225 = sst [smem:[%s224]] %s216
    $region33: #{tpu_custom_call.1} parent=1 // pred_fallthru
      _
    // Predicated region
    $region34: #{tpu_custom_call.1} parent=1 // pred_check
      _
    $region35: #{tpu_custom_call.1} parent=1 // pred_check_branch
      %227 = sbr.rel (0) target = $region37
    $region36: #{tpu_custom_call.1} parent=1 // pred_region
      %s229 = ssub.s32 16, 16
      %230 = vsyncadd [#allocation6], %s229
      %233 = dma.smem_to_hbm [#allocation9], 16, %s4, [#allocation6]
    $region37: #{tpu_custom_call.1} parent=1 // pred_fallthru
      _
    // Predicated region
    $region38: #{tpu_custom_call.1} parent=1 // pred_check
      _
    $region39: #{tpu_custom_call.1} parent=1 // pred_check_branch
      %235 = sbr.rel (0) target = $region41
    $region40: #{tpu_custom_call.1} parent=1 // pred_region
      %236 = dma.done [#allocation6], 16
    $region41: #{tpu_custom_call.1} parent=1 // pred_fallthru
      _
    %237 = sfence
    %238 = vsyncpa [#allocation5], 1
    %239 = vsyncpa [#allocation8], 1
    %240 = vsyncpa [#allocation6], 1

</llo_original>
